<compile_context>
chip_gen: v6e
topology: v6e:2x2x1
jax: 0.10.0
libtpu: 0.0.40
codegen_flags: <defaults>
</compile_context>

<pallas_src>
import jax
import jax.numpy as jnp
from jax.experimental import pallas as pl
from jax.experimental.pallas import tpu as pltpu


# ------------------------------ kernels ------------------------------------ #

def _aug_pad_flat_kernel(x_ref, o_ref):
    """Lane-flattened path.  x_ref: (TB, c*hw), o_ref: (TB, aug*hw).

    Two direct sliced stores (cast + zero) -- no full-tile temporary.
    """
    chw = x_ref.shape[1]
    o_ref[:, :chw] = x_ref[...].astype(o_ref.dtype)
    o_ref[:, chw:] = jnp.zeros((o_ref.shape[0], o_ref.shape[1] - chw), o_ref.dtype)


def _aug_pad_split_kernel(x_ref, o_ref):
    """Spatially-tiled path for very large feature maps.

    x_ref: (1, c, THW), o_ref: (1, aug, THW); channel axis stays on sublanes,
    the zero half only pays a sublane mask at the c boundary.
    """
    c = x_ref.shape[1]
    o_ref[:, :c, :] = x_ref[...].astype(o_ref.dtype)
    o_ref[:, c:, :] = jnp.zeros(
        (o_ref.shape[0], o_ref.shape[1] - c, o_ref.shape[2]), o_ref.dtype
    )


# ------------------------------ wrapper ------------------------------------ #

def _default_vmem_limit_bytes() -> int:
    """Per-generation scoped-VMEM limit: v5e/v6e (128 MiB physical) -> 64 MiB,
    v7x (64 MiB physical) or unknown -> 32 MiB (safe everywhere)."""
    try:
        cap = getattr(pltpu.get_tpu_info(), "vmem_capacity_bytes", None)
    except Exception:
        cap = None
    if cap is not None and cap >= (128 << 20):
        return 64 << 20
    return 32 << 20


def anode_initial_velocity(x, aug: int, *, vmem_limit_bytes: int | None = None):
    """JAX/Pallas equivalent of anode_initial_velocity.forward.

    x:   (b, c, h, w) any float/int dtype (cast to float32 like .float())
    out: (b, 1, aug, h, w) float32, out[:, :, :c] == x, remaining channels zero.
    (The PyTorch module hardcodes `:3`; c == 3 for CIFAR so this is identical.)
    """
    b, c, h, w = x.shape
    assert aug >= c, "augmented channel count must be >= input channels"
    hw = h * w

    if vmem_limit_bytes is None:
        vmem_limit_bytes = _default_vmem_limit_bytes()
    budget = (3 * vmem_limit_bytes) // 4          # sizing budget tied to the limit

    in_item = jnp.dtype(x.dtype).itemsize
    # double-buffered input + output bytes per batch row
    row_bytes = 2 * hw * (c * in_item + aug * 4)
    bytes_accessed = int(b * hw * (c * in_item + aug * 4))
    cost = pl.CostEstimate(flops=0, transcendentals=0, bytes_accessed=bytes_accessed)

    def _params(sem):
        return pltpu.CompilerParams(
            dimension_semantics=sem, vmem_limit_bytes=vmem_limit_bytes
        )

    # -------- fast path: lane-flattened, grid over batch only -------------- #
    if b * row_bytes <= budget or 8 * row_bytes <= budget:
        if b * row_bytes <= budget:
            tb = b                                 # single grid step, no splitting
        else:
            # largest multiple-of-8 batch tile that fits (multi-MiB per step)
            tb = min(b, ((budget // row_bytes) // 8) * 8)
        grid = (pl.cdiv(b, tb),)                   # ragged last block handled by Pallas

        x2 = x.reshape(b, c * hw)
        out = pl.pallas_call(
            _aug_pad_flat_kernel,
            out_shape=jax.ShapeDtypeStruct((b, aug * hw), jnp.float32),
            grid=grid,
            in_specs=[pl.BlockSpec((tb, c * hw), lambda i: (i, 0))],
            out_specs=pl.BlockSpec((tb, aug * hw), lambda i: (i, 0)),
            compiler_params=_params(("parallel",)),
            cost_estimate=cost,
        )(x2)
        return out.reshape(b, 1, aug, h, w)

    # -------- fallback: a single batch row is too big -> tile hw ----------- #
    per_lane_bytes = 2 * (c * in_item + aug * 4)   # double-buffered bytes per lane
    thw = min(hw, ((budget // per_lane_bytes) // 128) * 128)
    if thw < 128:
        raise ValueError(
            "anode_initial_velocity: channel count too large to fit a 128-lane "
            f"spatial tile in the {vmem_limit_bytes >> 20} MiB VMEM limit."
        )
    x3 = x.reshape(b, c, hw)
    grid = (b, pl.cdiv(hw, thw))
    out = pl.pallas_call(
        _aug_pad_split_kernel,
        out_shape=jax.ShapeDtypeStruct((b, aug, hw), jnp.float32),
        grid=grid,
        in_specs=[pl.BlockSpec((1, c, thw), lambda i, j: (i, 0, j))],
        out_specs=pl.BlockSpec((1, aug, thw), lambda i, j: (i, 0, j)),
        compiler_params=_params(("parallel", "parallel")),
        cost_estimate=cost,
    )(x3)
    return out.reshape(b, 1, aug, h, w)


# ------------------------------ self-test ----------------------------------- #

if __name__ == "__main__":
    key = jax.random.PRNGKey(0)
    b, c, h, w = 2, 3, 16, 16   # CIFAR-like: 3 input channels
    aug = 8                     # augmented channel count (module's self.aug)

    x = jax.random.normal(key, (b, c, h, w), dtype=jnp.float32)

    out = jax.block_until_ready(anode_initial_velocity(x, aug))

    # correctness check against the reference semantics
    ref = jnp.zeros((b, 1, aug, h, w), jnp.float32).at[:, :, :c].add(
        x[:, None].astype(jnp.float32)
    )
    assert out.shape == (b, 1, aug, h, w)
    assert out.dtype == jnp.float32
    assert jnp.allclose(out, ref), "mismatch vs reference"

    print("KERNEL_OK")
</pallas_src>

<mosaic_0001>
module attributes {stable_mosaic.version = 11 : i64} {
  func.func @_aug_pad_flat_kernel(%arg0: i32, %arg1: memref<2x768xf32, #tpu.memory_space<vmem>>, %arg2: memref<2x2048xf32, #tpu.memory_space<vmem>>) attributes {dimension_semantics = [#tpu.dimension_semantics<parallel>], iteration_bounds = array<i64: 1>, scalar_prefetch = 0 : i64, scratch_operands = 0 : i64, tpu.core_type = #tpu.core_type<tc>, window_params = [{transform_indices = @transform_0, window_bounds = array<i64: 2, 768>}, {transform_indices = @transform_1, window_bounds = array<i64: 2, 2048>}]} {
    %c0 = arith.constant 0 : index
    %c0_0 = arith.constant 0 : index
    %0 = vector.load %arg1[%c0, %c0_0] : memref<2x768xf32, #tpu.memory_space<vmem>>, vector<2x768xf32>
    %c0_1 = arith.constant 0 : index
    %c0_2 = arith.constant 0 : index
    %1 = vector.load %arg2[%c0_1, %c0_2] : memref<2x2048xf32, #tpu.memory_space<vmem>>, vector<2x768xf32>
    tpu.vector_store %arg2[%c0_1, %c0_2], %0 {strides = array<i32>} : memref<2x2048xf32, #tpu.memory_space<vmem>>, vector<2x768xf32>,
    %cst = arith.constant 0.000000e+00 : f32
    %2 = vector.broadcast %cst : f32 to vector<2x1280xf32>
    %c0_3 = arith.constant 0 : index
    %c768 = arith.constant 768 : index
    %3 = vector.load %arg2[%c0_3, %c768] : memref<2x2048xf32, #tpu.memory_space<vmem>>, vector<2x1280xf32>
    tpu.vector_store %arg2[%c0_3, %c768], %2 {strides = array<i32>} : memref<2x2048xf32, #tpu.memory_space<vmem>>, vector<2x1280xf32>,
    return
  }
  func.func @transform_0(%arg0: i32) -> (i32, i32) {
    %c0_i32 = arith.constant 0 : i32
    %c0_i32_0 = arith.constant 0 : i32
    return %arg0, %c0_i32 : i32, i32
  }
  func.func @transform_1(%arg0: i32) -> (i32, i32) {
    %c0_i32 = arith.constant 0 : i32
    %c0_i32_0 = arith.constant 0 : i32
    return %arg0, %c0_i32 : i32, i32
  }
}

</mosaic_0001>

<llo_original>
// kernel: tpu_custom_call.1
$region0: #{tpu_custom_call.1}
  #allocation0 [shape = 'u32[]', space=smem, size = 0x4, offset = 0x4, fixed_abs, tag = 'smem constant byte address 0x4 - core index']
  #allocation1 [shape = 'u32[144,128]{1,0:T(1,128)}', space=vmem, size = 0x12000, scoped, tag = 'internal scratch']
  %s0 = inlined_call_operand.hbm [shape: f32[2,768], index: 0, kind: input, shape index: {}]
  %s1 = inlined_call_operand.hbm [shape: f32[2,2048], index: 1, kind: output, shape index: {}]
  %s2 = sld [smem:[#allocation0]]
  $region18: #{tpu_custom_call.1} parent=0
    _
  %s4 = ssub.s32 1, %s2
  %s5 = scalar_select 0, %s4, %s2
  $region1: #{tpu_custom_call.1} parent=0
    #allocation2 [shape = 'u8[6144]{0}', space=vmem, size = 0x1800, scoped, tag = 'input window, operand 0, single buffered']
    #allocation3 [shape = 's32[1]{0}', space=sflag, size = 0x4, scoped, tag = 'scoped memory for tpu_custom_call.1']
    #allocation4 [shape = 's32[1]{0}', space=sflag, size = 0x4, scoped, tag = 'scoped memory for tpu_custom_call.1']
    #allocation5 [shape = 'u8[16384]{0}', space=vmem, size = 0x4000, scoped, tag = 'output window, operand 0, single buffered']
    %6 = vsyncpa [#allocation3], 0
    %7 = vsyncpa [#allocation4], 0
    // Predicated region
    $region2: #{tpu_custom_call.1} parent=1 // pred_check
      _
    $region3: #{tpu_custom_call.1} parent=1 // pred_check_branch
      %9 = sbr.rel (0) target = $region5
    $region4: #{tpu_custom_call.1} parent=1 // pred_region
      %s11 = ssub.s32 192, 192
      %12 = vsyncadd [#allocation3], %s11
      %s14 = sshll.u32 [#allocation2], 4
      %s15 = int_to_ptr.vmem [resolvable:$true] %s14
      %17 = dma.hbm_to_vmem [thread:$0]  %s0, 192, %s15, [#allocation3]
    $region5: #{tpu_custom_call.1} parent=1 // pred_fallthru
      _
    // Predicated region
    $region6: #{tpu_custom_call.1} parent=1 // pred_check
      _
    $region7: #{tpu_custom_call.1} parent=1 // pred_check_branch
      %19 = sbr.rel (0) target = $region9
    $region8: #{tpu_custom_call.1} parent=1 // pred_region
      %20 = dma.done [#allocation3], 192
    $region9: #{tpu_custom_call.1} parent=1 // pred_fallthru
      _
    %v21 = vld [vmem:[#allocation2] sm:$0xff]
    %v22 = vld [vmem:[#allocation2 + $0x8] sm:$0xf]
    %23 = vst [vmem:[#allocation5] sm:$0xff] %v21
    %24 = vst [vmem:[#allocation5 + $0x8] sm:$0xf] %v22
    %25 = vst [vmem:[#allocation5 + $0xc] sm:$0xff] 0.0
    %26 = vst [vmem:[#allocation5 + $0x14] sm:$0xff] 0.0
    %27 = vst [vmem:[#allocation5 + $0x1c] sm:$0xf] 0.0
    // Predicated region
    $region10: #{tpu_custom_call.1} parent=1 // pred_check
      _
    $region11: #{tpu_custom_call.1} parent=1 // pred_check_branch
      %29 = sbr.rel (0) target = $region13
    $region12: #{tpu_custom_call.1} parent=1 // pred_region
      %s31 = ssub.s32 512, 512
      %32 = vsyncadd [#allocation4], %s31
      %s34 = sshll.u32 [#allocation5], 4
      %s35 = int_to_ptr.vmem [resolvable:$true] %s34
      %37 = dma.vmem_to_hbm [thread:$0]  %s35, 512, %s1, [#allocation4]
    $region13: #{tpu_custom_call.1} parent=1 // pred_fallthru
      _
    // Predicated region
    $region14: #{tpu_custom_call.1} parent=1 // pred_check
      _
    $region15: #{tpu_custom_call.1} parent=1 // pred_check_branch
      %39 = sbr.rel (0) target = $region17
    $region16: #{tpu_custom_call.1} parent=1 // pred_region
      %40 = dma.done [#allocation4], 512
    $region17: #{tpu_custom_call.1} parent=1 // pred_fallthru
      _
    %41 = vsyncpa [#allocation3], 1
    %42 = vsyncpa [#allocation4], 1

</llo_original>
